<compile_context>
chip_gen: v7x
topology: tpu7x:2x2x1
jax: 0.10.0
libtpu: 0.0.40
codegen_flags: <defaults>
</compile_context>

<pallas_src>
import jax
import jax.numpy as jnp
from jax.experimental import pallas as pl
from jax.experimental.pallas import tpu as pltpu

M1 = 3
M2 = 3

# Packed-parameter layout (flat f32 vector, lives in SMEM).
_W1_OFF = 0                     # fc1 weight, stored (2, M1) row-major (i.e. W^T)
_B1_OFF = _W1_OFF + 2 * M1      # fc1 bias   (M1,)
_W2_OFF = _B1_OFF + M1          # fc2 weight, stored (M1, M2) row-major
_B2_OFF = _W2_OFF + M1 * M2     # fc2 bias   (M2,)
_W3_OFF = _B2_OFF + M2          # fc_out weight, stored (M2,)
_B3_OFF = _W3_OFF + M2          # fc_out bias ()
_NPARAMS = _B3_OFF + 1          # = 25


def mlp_kernel(p_ref, x_ref, o_ref):
    # x_ref: (2, tile_s, 128) -- dense lane+sublane slabs per feature.
    x0 = x_ref[0]                # (tile_s, 128)
    x1 = x_ref[1]                # (tile_s, 128)

    # fc1 + tanh: fully-unrolled scalar-broadcast FMAs (K=2, N=3). No MXU.
    h1 = []
    for j in range(M1):
        acc = (x0 * p_ref[_W1_OFF + 0 * M1 + j]
               + x1 * p_ref[_W1_OFF + 1 * M1 + j]
               + p_ref[_B1_OFF + j])
        h1.append(jnp.tanh(acc))

    # fc2 + tanh (K=3, N=3).
    h2 = []
    for k in range(M2):
        acc = h1[0] * p_ref[_W2_OFF + 0 * M2 + k]
        for j in range(1, M1):
            acc = acc + h1[j] * p_ref[_W2_OFF + j * M2 + k]
        h2.append(jnp.tanh(acc + p_ref[_B2_OFF + k]))

    # fc_out + sigmoid (K=3, N=1).
    acc = h2[0] * p_ref[_W3_OFF + 0]
    for k in range(1, M2):
        acc = acc + h2[k] * p_ref[_W3_OFF + k]
    logits = acc + p_ref[_B3_OFF]

    # sigmoid = 1 / (1 + exp(-z)): exp + approx reciprocal land on the EUP slot;
    # one Newton step (2 cheap VPU ops) restores full f32 accuracy.
    denom = 1.0 + jnp.exp(-logits)
    r = pl.reciprocal(denom, approx=True)
    r = r * (2.0 - denom * r)
    o_ref[...] = r


def _round_up(n, m):
    return ((n + m - 1) // m) * m


def pack_params(params):
    """Flatten all weights/biases into one f32 vector (SMEM-friendly)."""
    return jnp.concatenate([
        params["w1"].reshape(-1), params["b1"].reshape(-1),
        params["w2"].reshape(-1), params["b2"].reshape(-1),
        params["w3"].reshape(-1), params["b3"].reshape(-1),
    ]).astype(jnp.float32)


def network_forward(x, params, max_tile_s=2048):
    """x: (B, 2) float32 (PyTorch nn.Linear convention). Returns (B, 1).

    max_tile_s = sublane extent of the batch tile; tile_s * 128 rows per grid
    step.  2048 (~256K rows, ~14 MiB live VMEM) is safe on v7x's 64 MiB VMEM;
    v5e/v6e could go larger but are already at the HBM roofline here.
    """
    B = x.shape[0]

    # Lane-dense 3-D layout: batch -> (sublane, lane) = (S, 128).
    S = max(pl.cdiv(B, 128), 1)                 # 128-lane rows needed
    num_tiles = pl.cdiv(S, max_tile_s)
    tile_s = _round_up(pl.cdiv(S, num_tiles), 8)  # multiple of 8 sublanes
    S_pad = tile_s * num_tiles
    B_pad = S_pad * 128

    # Feature-major transpose + single fused pad, then a free bitcast-reshape.
    xt = jnp.pad(x.astype(jnp.float32).T, ((0, 0), (0, B_pad - B)))
    xt = xt.reshape(2, S_pad, 128)
    p = pack_params(params)

    cost = pl.CostEstimate(
        flops=40 * B_pad,            # ~18 MACs + bias adds per row
        transcendentals=8 * B_pad,   # 6 tanh + exp + reciprocal per row
        bytes_accessed=12 * B_pad + 4 * _NPARAMS,
    )

    out = pl.pallas_call(
        mlp_kernel,
        out_shape=jax.ShapeDtypeStruct((S_pad, 128), jnp.float32),
        grid=(num_tiles,),
        in_specs=[
            pl.BlockSpec(memory_space=pltpu.MemorySpace.SMEM),      # packed params
            pl.BlockSpec((2, tile_s, 128), lambda i: (0, i, 0)),    # x tile
        ],
        out_specs=pl.BlockSpec((tile_s, 128), lambda i: (i, 0)),
        compiler_params=pltpu.CompilerParams(
            dimension_semantics=("parallel",)),
        cost_estimate=cost,
    )(p, xt)

    # Back to the PyTorch (B, 1) convention; drop padded rows.
    return out.reshape(-1)[:B][:, None]


def init_params(key):
    """Deterministic init mirroring nn.Linear shapes; stored as (in, out) + row biases."""
    k1, k2, k3, k4, k5, k6 = jax.random.split(key, 6)
    # PyTorch fc1: weight (M1, 2), bias (M1,) -> stored W^T (2, M1), b (1, M1)
    w1 = jax.random.normal(k1, (2, M1), jnp.float32) * 0.5
    b1 = jax.random.normal(k2, (1, M1), jnp.float32) * 0.1
    # fc2: (M2, M1) -> (M1, M2)
    w2 = jax.random.normal(k3, (M1, M2), jnp.float32) * 0.5
    b2 = jax.random.normal(k4, (1, M2), jnp.float32) * 0.1
    # fc_out: (1, M2) -> (M2, 1)
    w3 = jax.random.normal(k5, (M2, 1), jnp.float32) * 0.5
    b3 = jax.random.normal(k6, (1, 1), jnp.float32) * 0.1
    return {"w1": w1, "b1": b1, "w2": w2, "b2": b2, "w3": w3, "b3": b3}


def reference_forward(x, p):
    h1 = jnp.tanh(x @ p["w1"] + p["b1"])
    h2 = jnp.tanh(h1 @ p["w2"] + p["b2"])
    return jax.nn.sigmoid(h2 @ p["w3"] + p["b3"])


if __name__ == "__main__":
    key = jax.random.PRNGKey(0)
    kx, kp = jax.random.split(key)
    batch = 8
    x = jax.random.normal(kx, (batch, 2), jnp.float32)
    params = init_params(kp)

    fwd = jax.jit(network_forward)
    out = fwd(x, params)
    out = jax.block_until_ready(out)

    ref = reference_forward(x, params)
    assert out.shape == (batch, 1)
    assert jnp.allclose(out, ref, atol=1e-5, rtol=1e-5)
    print("KERNEL_OK")
</pallas_src>

<mosaic_0001>
module attributes {stable_mosaic.version = 11 : i64} {
  func.func @mlp_kernel(%arg0: i32, %arg1: memref<25xf32, #tpu.memory_space<smem>>, %arg2: memref<2x8x128xf32, #tpu.memory_space<vmem>>, %arg3: memref<8x128xf32, #tpu.memory_space<vmem>>) attributes {dimension_semantics = [#tpu.dimension_semantics<parallel>], iteration_bounds = array<i64: 1>, scalar_prefetch = 0 : i64, scratch_operands = 0 : i64, tpu.core_type = #tpu.core_type<tc>, window_params = [{transform_indices = @transform_0, window_bounds = array<i64: 25>}, {transform_indices = @transform_1, window_bounds = array<i64: 2, 8, 128>}, {transform_indices = @transform_2, window_bounds = array<i64: 8, 128>}]} {
    %c0 = arith.constant 0 : index
    %c0_0 = arith.constant 0 : index
    %c0_1 = arith.constant 0 : index
    %0 = vector.load %arg2[%c0, %c0_0, %c0_1] : memref<2x8x128xf32, #tpu.memory_space<vmem>>, vector<1x8x128xf32>
    %1 = vector.shape_cast %0 : vector<1x8x128xf32> to vector<8x128xf32>
    %c1 = arith.constant 1 : index
    %c0_2 = arith.constant 0 : index
    %c0_3 = arith.constant 0 : index
    %2 = vector.load %arg2[%c1, %c0_2, %c0_3] : memref<2x8x128xf32, #tpu.memory_space<vmem>>, vector<1x8x128xf32>
    %3 = vector.shape_cast %2 : vector<1x8x128xf32> to vector<8x128xf32>
    %c0_4 = arith.constant 0 : index
    %4 = memref.load %arg1[%c0_4] : memref<25xf32, #tpu.memory_space<smem>>
    %5 = vector.broadcast %4 : f32 to vector<8x128xf32>
    %6 = arith.mulf %1, %5 : vector<8x128xf32>
    %c3 = arith.constant 3 : index
    %7 = memref.load %arg1[%c3] : memref<25xf32, #tpu.memory_space<smem>>
    %8 = vector.broadcast %7 : f32 to vector<8x128xf32>
    %9 = arith.mulf %3, %8 : vector<8x128xf32>
    %10 = arith.addf %6, %9 : vector<8x128xf32>
    %c6 = arith.constant 6 : index
    %11 = memref.load %arg1[%c6] : memref<25xf32, #tpu.memory_space<smem>>
    %12 = vector.broadcast %11 : f32 to vector<8x128xf32>
    %13 = arith.addf %10, %12 : vector<8x128xf32>
    %14 = math.tanh %13 : vector<8x128xf32>
    %c1_5 = arith.constant 1 : index
    %15 = memref.load %arg1[%c1_5] : memref<25xf32, #tpu.memory_space<smem>>
    %16 = vector.broadcast %15 : f32 to vector<8x128xf32>
    %17 = arith.mulf %1, %16 : vector<8x128xf32>
    %c4 = arith.constant 4 : index
    %18 = memref.load %arg1[%c4] : memref<25xf32, #tpu.memory_space<smem>>
    %19 = vector.broadcast %18 : f32 to vector<8x128xf32>
    %20 = arith.mulf %3, %19 : vector<8x128xf32>
    %21 = arith.addf %17, %20 : vector<8x128xf32>
    %c7 = arith.constant 7 : index
    %22 = memref.load %arg1[%c7] : memref<25xf32, #tpu.memory_space<smem>>
    %23 = vector.broadcast %22 : f32 to vector<8x128xf32>
    %24 = arith.addf %21, %23 : vector<8x128xf32>
    %25 = math.tanh %24 : vector<8x128xf32>
    %c2 = arith.constant 2 : index
    %26 = memref.load %arg1[%c2] : memref<25xf32, #tpu.memory_space<smem>>
    %27 = vector.broadcast %26 : f32 to vector<8x128xf32>
    %28 = arith.mulf %1, %27 : vector<8x128xf32>
    %c5 = arith.constant 5 : index
    %29 = memref.load %arg1[%c5] : memref<25xf32, #tpu.memory_space<smem>>
    %30 = vector.broadcast %29 : f32 to vector<8x128xf32>
    %31 = arith.mulf %3, %30 : vector<8x128xf32>
    %32 = arith.addf %28, %31 : vector<8x128xf32>
    %c8 = arith.constant 8 : index
    %33 = memref.load %arg1[%c8] : memref<25xf32, #tpu.memory_space<smem>>
    %34 = vector.broadcast %33 : f32 to vector<8x128xf32>
    %35 = arith.addf %32, %34 : vector<8x128xf32>
    %36 = math.tanh %35 : vector<8x128xf32>
    %c9 = arith.constant 9 : index
    %37 = memref.load %arg1[%c9] : memref<25xf32, #tpu.memory_space<smem>>
    %38 = vector.broadcast %37 : f32 to vector<8x128xf32>
    %39 = arith.mulf %14, %38 : vector<8x128xf32>
    %c12 = arith.constant 12 : index
    %40 = memref.load %arg1[%c12] : memref<25xf32, #tpu.memory_space<smem>>
    %41 = vector.broadcast %40 : f32 to vector<8x128xf32>
    %42 = arith.mulf %25, %41 : vector<8x128xf32>
    %43 = arith.addf %39, %42 : vector<8x128xf32>
    %c15 = arith.constant 15 : index
    %44 = memref.load %arg1[%c15] : memref<25xf32, #tpu.memory_space<smem>>
    %45 = vector.broadcast %44 : f32 to vector<8x128xf32>
    %46 = arith.mulf %36, %45 : vector<8x128xf32>
    %47 = arith.addf %43, %46 : vector<8x128xf32>
    %c18 = arith.constant 18 : index
    %48 = memref.load %arg1[%c18] : memref<25xf32, #tpu.memory_space<smem>>
    %49 = vector.broadcast %48 : f32 to vector<8x128xf32>
    %50 = arith.addf %47, %49 : vector<8x128xf32>
    %51 = math.tanh %50 : vector<8x128xf32>
    %c10 = arith.constant 10 : index
    %52 = memref.load %arg1[%c10] : memref<25xf32, #tpu.memory_space<smem>>
    %53 = vector.broadcast %52 : f32 to vector<8x128xf32>
    %54 = arith.mulf %14, %53 : vector<8x128xf32>
    %c13 = arith.constant 13 : index
    %55 = memref.load %arg1[%c13] : memref<25xf32, #tpu.memory_space<smem>>
    %56 = vector.broadcast %55 : f32 to vector<8x128xf32>
    %57 = arith.mulf %25, %56 : vector<8x128xf32>
    %58 = arith.addf %54, %57 : vector<8x128xf32>
    %c16 = arith.constant 16 : index
    %59 = memref.load %arg1[%c16] : memref<25xf32, #tpu.memory_space<smem>>
    %60 = vector.broadcast %59 : f32 to vector<8x128xf32>
    %61 = arith.mulf %36, %60 : vector<8x128xf32>
    %62 = arith.addf %58, %61 : vector<8x128xf32>
    %c19 = arith.constant 19 : index
    %63 = memref.load %arg1[%c19] : memref<25xf32, #tpu.memory_space<smem>>
    %64 = vector.broadcast %63 : f32 to vector<8x128xf32>
    %65 = arith.addf %62, %64 : vector<8x128xf32>
    %66 = math.tanh %65 : vector<8x128xf32>
    %c11 = arith.constant 11 : index
    %67 = memref.load %arg1[%c11] : memref<25xf32, #tpu.memory_space<smem>>
    %68 = vector.broadcast %67 : f32 to vector<8x128xf32>
    %69 = arith.mulf %14, %68 : vector<8x128xf32>
    %c14 = arith.constant 14 : index
    %70 = memref.load %arg1[%c14] : memref<25xf32, #tpu.memory_space<smem>>
    %71 = vector.broadcast %70 : f32 to vector<8x128xf32>
    %72 = arith.mulf %25, %71 : vector<8x128xf32>
    %73 = arith.addf %69, %72 : vector<8x128xf32>
    %c17 = arith.constant 17 : index
    %74 = memref.load %arg1[%c17] : memref<25xf32, #tpu.memory_space<smem>>
    %75 = vector.broadcast %74 : f32 to vector<8x128xf32>
    %76 = arith.mulf %36, %75 : vector<8x128xf32>
    %77 = arith.addf %73, %76 : vector<8x128xf32>
    %c20 = arith.constant 20 : index
    %78 = memref.load %arg1[%c20] : memref<25xf32, #tpu.memory_space<smem>>
    %79 = vector.broadcast %78 : f32 to vector<8x128xf32>
    %80 = arith.addf %77, %79 : vector<8x128xf32>
    %81 = math.tanh %80 : vector<8x128xf32>
    %c21 = arith.constant 21 : index
    %82 = memref.load %arg1[%c21] : memref<25xf32, #tpu.memory_space<smem>>
    %83 = vector.broadcast %82 : f32 to vector<8x128xf32>
    %84 = arith.mulf %51, %83 : vector<8x128xf32>
    %c22 = arith.constant 22 : index
    %85 = memref.load %arg1[%c22] : memref<25xf32, #tpu.memory_space<smem>>
    %86 = vector.broadcast %85 : f32 to vector<8x128xf32>
    %87 = arith.mulf %66, %86 : vector<8x128xf32>
    %88 = arith.addf %84, %87 : vector<8x128xf32>
    %c23 = arith.constant 23 : index
    %89 = memref.load %arg1[%c23] : memref<25xf32, #tpu.memory_space<smem>>
    %90 = vector.broadcast %89 : f32 to vector<8x128xf32>
    %91 = arith.mulf %81, %90 : vector<8x128xf32>
    %92 = arith.addf %88, %91 : vector<8x128xf32>
    %c24 = arith.constant 24 : index
    %93 = memref.load %arg1[%c24] : memref<25xf32, #tpu.memory_space<smem>>
    %94 = vector.broadcast %93 : f32 to vector<8x128xf32>
    %95 = arith.addf %92, %94 : vector<8x128xf32>
    %cst = arith.constant 0.000000e+00 : f32
    %96 = vector.broadcast %cst : f32 to vector<8x128xf32>
    %97 = arith.subf %96, %95 : vector<8x128xf32>
    %98 = math.exp %97 : vector<8x128xf32>
    %cst_6 = arith.constant 1.000000e+00 : f32
    %99 = vector.broadcast %cst_6 : f32 to vector<8x128xf32>
    %100 = arith.addf %99, %98 : vector<8x128xf32>
    %101 = tpu.reciprocal %100 {approx = true} : vector<8x128xf32> -> vector<8x128xf32>
    %102 = arith.mulf %100, %101 : vector<8x128xf32>
    %cst_7 = arith.constant 2.000000e+00 : f32
    %103 = vector.broadcast %cst_7 : f32 to vector<8x128xf32>
    %104 = arith.subf %103, %102 : vector<8x128xf32>
    %105 = arith.mulf %101, %104 : vector<8x128xf32>
    %c0_8 = arith.constant 0 : index
    %c0_9 = arith.constant 0 : index
    %106 = vector.load %arg3[%c0_8, %c0_9] : memref<8x128xf32, #tpu.memory_space<vmem>>, vector<8x128xf32>
    tpu.vector_store %arg3[%c0_8, %c0_9], %105 {strides = array<i32>} : memref<8x128xf32, #tpu.memory_space<vmem>>, vector<8x128xf32>,
    return
  }
  func.func @transform_0(%arg0: i32) -> i32 {
    %c0_i32 = arith.constant 0 : i32
    %c0_i32_0 = arith.constant 0 : i32
    return %c0_i32 : i32
  }
  func.func @transform_1(%arg0: i32) -> (i32, i32, i32) {
    %c0_i32 = arith.constant 0 : i32
    %c0_i32_0 = arith.constant 0 : i32
    %c0_i32_1 = arith.constant 0 : i32
    return %c0_i32, %arg0, %c0_i32_0 : i32, i32, i32
  }
  func.func @transform_2(%arg0: i32) -> (i32, i32) {
    %c0_i32 = arith.constant 0 : i32
    %c0_i32_0 = arith.constant 0 : i32
    return %arg0, %c0_i32 : i32, i32
  }
}

</mosaic_0001>

<llo_original>
// kernel: network_forward.1
$region0: #{network_forward.1}
  #allocation0 [shape = 'u32[]', space=smem, size = 0x4, offset = 0x4, fixed_abs, tag = 'smem constant byte address 0x4 - core index']
  #allocation1 [shape = 'u32[144,128]{1,0:T(1,128)}', space=vmem, size = 0x12000, scoped, tag = 'internal scratch']
  %s0 = inlined_call_operand.vmem [shape: f32[25], index: 0, kind: input, shape index: {}]
  %s1 = inlined_call_operand.vmem [shape: f32[2,8,128], index: 1, kind: input, shape index: {}]
  %s2 = inlined_call_operand.vmem [shape: f32[8,128], index: 2, kind: output, shape index: {}]
  %s3 = sld [smem:[#allocation0]]
  $region22: #{network_forward.1} parent=0
    _
  %s5 = ssub.s32 1, %s3
  %s6 = scalar_select 0, %s5, %s3
  $region1: #{network_forward.1} parent=0
    #allocation2 [shape = 'u8[512]{0}', space=smem, size = 0x200, scoped, tag = 'input window, operand 0, single buffered']
    #allocation3 [shape = 's32[1]{0}', space=sflag, size = 0x4, scoped, tag = 'scoped memory for network_forward.1']
    %7 = vsyncpa [#allocation3], 0
    // Predicated region
    $region2: #{network_forward.1} parent=1 // pred_check
      _
    $region3: #{network_forward.1} parent=1 // pred_check_branch
      %9 = sbr.rel (0) target = $region5
    $region4: #{network_forward.1} parent=1 // pred_region
      %s11 = ssub.s32 16, 16
      %12 = vsyncadd [#allocation3], %s11
      %s14 = sshll.u32 %s0, 4
      %s15 = int_to_ptr.vmem [resolvable:$true] %s14
      %17 = dma.vmem_to_smem %s15, 16, [#allocation2], [#allocation3]
    $region5: #{network_forward.1} parent=1 // pred_fallthru
      _
    // Predicated region
    $region6: #{network_forward.1} parent=1 // pred_check
      _
    $region7: #{network_forward.1} parent=1 // pred_check_branch
      %19 = sbr.rel (0) target = $region9
    $region8: #{network_forward.1} parent=1 // pred_region
      _
    $region9: #{network_forward.1} parent=1 // pred_fallthru
      _
    // Predicated region
    $region10: #{network_forward.1} parent=1 // pred_check
      _
    $region11: #{network_forward.1} parent=1 // pred_check_branch
      %21 = sbr.rel (0) target = $region13
    $region12: #{network_forward.1} parent=1 // pred_region
      %22 = dma.done [#allocation3], 16
    $region13: #{network_forward.1} parent=1 // pred_fallthru
      _
    %23 = sfence
    %v24 = vld [vmem:[%s1] sm:$0xff]
    %s25 = scalar_lea.vmem %s1, 8
    %v26 = vld [vmem:[%s25] sm:$0xff]
    %s27 = sld [smem:[#allocation2]]
    %v28 = vstv %s27
    %v29 = vmul.f32 %v24, %v28
    %s30 = sld [smem:[#allocation2 + $0x3]]
    %v31 = vstv %s30
    %v32 = vmul.f32 %v26, %v31
    %v33 = vadd.f32 %v29, %v32
    %s34 = sld [smem:[#allocation2 + $0x6]]
    %v35 = vstv %s34
    %v36 = vadd.f32 %v33, %v35
    %v37 = vtanh.pop %v36
    %s38 = sld [smem:[#allocation2 + $0x1]]
    %v39 = vstv %s38
    %v40 = vmul.f32 %v24, %v39
    %s41 = sld [smem:[#allocation2 + $0x4]]
    %v42 = vstv %s41
    %v43 = vmul.f32 %v26, %v42
    %v44 = vadd.f32 %v40, %v43
    %s45 = sld [smem:[#allocation2 + $0x7]]
    %v46 = vstv %s45
    %v47 = vadd.f32 %v44, %v46
    %v48 = vtanh.pop %v47
    %s49 = sld [smem:[#allocation2 + $0x2]]
    %v50 = vstv %s49
    %v51 = vmul.f32 %v24, %v50
    %s52 = sld [smem:[#allocation2 + $0x5]]
    %v53 = vstv %s52
    %v54 = vmul.f32 %v26, %v53
    %v55 = vadd.f32 %v51, %v54
    %s56 = sld [smem:[#allocation2 + $0x8]]
    %v57 = vstv %s56
    %v58 = vadd.f32 %v55, %v57
    %v59 = vtanh.pop %v58
    %s60 = sld [smem:[#allocation2 + $0x9]]
    %v61 = vstv %s60
    %v62 = vmul.f32 %v37, %v61
    %s63 = sld [smem:[#allocation2 + $0xc]]
    %v64 = vstv %s63
    %v65 = vmul.f32 %v48, %v64
    %v66 = vadd.f32 %v62, %v65
    %s67 = sld [smem:[#allocation2 + $0xf]]
    %v68 = vstv %s67
    %v69 = vmul.f32 %v59, %v68
    %v70 = vadd.f32 %v66, %v69
    %s71 = sld [smem:[#allocation2 + $0x12]]
    %v72 = vstv %s71
    %v73 = vadd.f32 %v70, %v72
    %v74 = vtanh.pop %v73
    %s75 = sld [smem:[#allocation2 + $0xa]]
    %v76 = vstv %s75
    %v77 = vmul.f32 %v37, %v76
    %s78 = sld [smem:[#allocation2 + $0xd]]
    %v79 = vstv %s78
    %v80 = vmul.f32 %v48, %v79
    %v81 = vadd.f32 %v77, %v80
    %s82 = sld [smem:[#allocation2 + $0x10]]
    %v83 = vstv %s82
    %v84 = vmul.f32 %v59, %v83
    %v85 = vadd.f32 %v81, %v84
    %s86 = sld [smem:[#allocation2 + $0x13]]
    %v87 = vstv %s86
    %v88 = vadd.f32 %v85, %v87
    %v89 = vtanh.pop %v88
    %s90 = sld [smem:[#allocation2 + $0xb]]
    %v91 = vstv %s90
    %v92 = vmul.f32 %v37, %v91
    %s93 = sld [smem:[#allocation2 + $0xe]]
    %v94 = vstv %s93
    %v95 = vmul.f32 %v48, %v94
    %v96 = vadd.f32 %v92, %v95
    %s97 = sld [smem:[#allocation2 + $0x11]]
    %v98 = vstv %s97
    %v99 = vmul.f32 %v59, %v98
    %v100 = vadd.f32 %v96, %v99
    %s101 = sld [smem:[#allocation2 + $0x14]]
    %v102 = vstv %s101
    %v103 = vadd.f32 %v100, %v102
    %v104 = vtanh.pop %v103
    %s105 = sld [smem:[#allocation2 + $0x15]]
    %v106 = vstv %s105
    %v107 = vmul.f32 %v74, %v106
    %s108 = sld [smem:[#allocation2 + $0x16]]
    %v109 = vstv %s108
    %v110 = vmul.f32 %v89, %v109
    %v111 = vadd.f32 %v107, %v110
    %s112 = sld [smem:[#allocation2 + $0x17]]
    %v113 = vstv %s112
    %v114 = vmul.f32 %v104, %v113
    %v115 = vadd.f32 %v111, %v114
    %s116 = sld [smem:[#allocation2 + $0x18]]
    %v117 = vstv %s116
    %v118 = vadd.f32 %v115, %v117
    %v119 = vsub.f32 0.0, %v118
    %v120 = vmul.f32 %v119, 1.442695
    %v121 = vpow.pop %v120
    %v122 = vadd.f32 %v121, 1.0
    %v123 = vrcp.pop %v122
    %v124 = vmul.f32 %v122, %v123
    %v125 = vsub.f32 2.0, %v124
    %v126 = vmul.f32 %v123, %v125
    %127 = vst [vmem:[%s2] sm:$0xff] %v126
    // Predicated region
    $region14: #{network_forward.1} parent=1 // pred_check
      _
    $region15: #{network_forward.1} parent=1 // pred_check_branch
      %129 = sbr.rel (0) target = $region17
    $region16: #{network_forward.1} parent=1 // pred_region
      _
    $region17: #{network_forward.1} parent=1 // pred_fallthru
      _
    // Predicated region
    $region18: #{network_forward.1} parent=1 // pred_check
      _
    $region19: #{network_forward.1} parent=1 // pred_check_branch
      %131 = sbr.rel (0) target = $region21
    $region20: #{network_forward.1} parent=1 // pred_region
      _
    $region21: #{network_forward.1} parent=1 // pred_fallthru
      _
    %132 = vsyncpa [#allocation3], 1

</llo_original>
